<compile_context>
chip_gen: v7x
topology: tpu7x:2x2x1
jax: 0.10.0
libtpu: 0.0.40
codegen_flags: <defaults>
</compile_context>

<pallas_src>
import math
import functools

import jax
import jax.numpy as jnp
from jax.experimental import pallas as pl
from jax.experimental.pallas import tpu as pltpu


# ------------------------------------------------------------------ kernels

def _mm_kernel(a_ref, b_ref, o_ref, acc_ref, *, k_axis):
    """Tiled (M, K) @ (K, N) with an f32 VMEM accumulator.

    The reduction is grid axis `k_axis` (innermost, "arbitrary")."""
    k = pl.program_id(k_axis)

    @pl.when(k == 0)
    def _():
        acc_ref[...] = jnp.zeros_like(acc_ref)

    acc_ref[...] += jnp.dot(a_ref[...], b_ref[...],
                            preferred_element_type=jnp.float32)

    @pl.when(k == pl.num_programs(k_axis) - 1)
    def _():
        o_ref[...] = acc_ref[...].astype(o_ref.dtype)


def _mm_bias_kernel(a_ref, b_ref, bias_ref, o_ref, acc_ref, *, k_axis):
    """Same as _mm_kernel with a (1, tn) f32 bias fused into the finalize."""
    k = pl.program_id(k_axis)

    @pl.when(k == 0)
    def _():
        acc_ref[...] = jnp.zeros_like(acc_ref)

    acc_ref[...] += jnp.dot(a_ref[...], b_ref[...],
                            preferred_element_type=jnp.float32)

    @pl.when(k == pl.num_programs(k_axis) - 1)
    def _():
        o_ref[...] = (acc_ref[...] + bias_ref[...]).astype(o_ref.dtype)


# ------------------------------------------------------------------ helpers

def _round_up(x, m):
    return ((x + m - 1) // m) * m


def _pick_tile(dim, max_tile, unit=128):
    """Largest multiple of `unit` that divides `dim` and is <= max_tile."""
    best = min(dim, unit)
    t = unit
    cap = min(dim, max_tile)
    while t <= cap:
        if dim % t == 0:
            best = t
        t += unit
    return best


_MAX_MN_TILE = 512     # M / output-N tile cap (512-class tiles per review)
_MAX_K_TILE = 2048     # reduction tile cap when K must be tiled
_FULL_K_MAX = 2048     # use the whole (unpadded) K dim when <= this


@functools.lru_cache(maxsize=None)
def _vmem_limit_bytes():
    """Generation-aware scoped-VMEM limit: 96 MiB v5e/v6e, ~48 MiB v7x."""
    try:
        cap = int(pltpu.get_tpu_info().vmem_capacity_bytes)
        return int(min(96 * 1024 * 1024, (cap // 4) * 3))
    except Exception:
        return 48 * 1024 * 1024   # safe on every generation (v7x has 64 MiB)


# ------------------------------------------------------------------ wrapper

@functools.partial(jax.jit, static_argnames=("compute_dtype",))
def graph_convolution(x, adj, weight, bias=None, *, compute_dtype=jnp.bfloat16):
    """Pallas GCN layer forward: adj @ (x @ weight) (+ bias).

    x:      (B, N, F_in) or (N, F_in)
    adj:    (N, N), shared across the batch
    weight: (F_in, F_out)
    bias:   (1, 1, F_out) or None
    compute_dtype: MXU operand dtype (default bf16; accumulation is f32).
    Returns (B, N, F_out) in x.dtype.
    """
    x_was_2d = (x.ndim == 2)
    if x_was_2d:
        x = x[None]
    B, N, F_in = x.shape
    F_out = weight.shape[1]
    out_dtype = x.dtype
    cdt = jnp.dtype(compute_dtype)

    # ------------------------------------------------------------ padding
    # N: sublane-only pad (x8) when it fits untiled, lane pad (x128) otherwise.
    N_pad = _round_up(N, 8) if N <= _MAX_MN_TILE else _round_up(N, 128)
    # F_out: lane dim of support / output -> 128-multiple for dense stores.
    F_out_pad = _round_up(F_out, 128)
    # F_in: stage-1 K.  Keep the exact size (no zero-K waste) when it fits a
    # single VMEM block; otherwise pad to a 128 multiple and tile.
    F_in_pad = F_in if F_in <= _FULL_K_MAX else _round_up(F_in, 128)

    # Only materialize padded HBM copies when a dim actually changes.
    if (N_pad, F_in_pad) == (N, F_in):
        x_p = x.astype(cdt)
    else:
        x_p = (jnp.zeros((B, N_pad, F_in_pad), cdt)
               .at[:, :N, :F_in].set(x.astype(cdt)))
    if N_pad == N:
        adj_p = adj.astype(cdt)
    else:
        adj_p = jnp.zeros((N_pad, N_pad), cdt).at[:N, :N].set(adj.astype(cdt))
    if (F_in_pad, F_out_pad) == (F_in, F_out):
        w_p = weight.astype(cdt)
    else:
        w_p = (jnp.zeros((F_in_pad, F_out_pad), cdt)
               .at[:F_in, :F_out].set(weight.astype(cdt)))

    vmem_limit = _vmem_limit_bytes()
    cdt_size = jnp.dtype(cdt).itemsize
    out_size = jnp.dtype(out_dtype).itemsize

    # ---------------------------------------------- stage 1: support = x @ W
    # Written directly in the batch-folded (N_pad, B*F_out_pad) layout that
    # stage 2 consumes (no inter-stage transpose / re-layout pass).
    tm1 = N_pad if N_pad <= _MAX_MN_TILE else _pick_tile(N_pad, _MAX_MN_TILE)
    tn1 = _pick_tile(F_out_pad, _MAX_MN_TILE)
    tk1 = F_in_pad if F_in_pad == F_in else _pick_tile(F_in_pad, _MAX_K_TILE)
    nf1 = F_out_pad // tn1
    k1_steps = F_in_pad // tk1

    cost1 = pl.CostEstimate(
        flops=2 * B * N_pad * F_in_pad * F_out_pad,
        transcendentals=0,
        bytes_accessed=(B * N_pad * F_in_pad * nf1
                        + F_in_pad * F_out_pad * B * (N_pad // tm1)
                        + N_pad * B * F_out_pad) * cdt_size,
    )
    support = pl.pallas_call(
        functools.partial(_mm_kernel, k_axis=3),
        out_shape=jax.ShapeDtypeStruct((N_pad, B * F_out_pad), cdt),
        grid_spec=pltpu.PrefetchScalarGridSpec(
            num_scalar_prefetch=0,
            grid=(B, N_pad // tm1, nf1, k1_steps),
            in_specs=[
                # batch dim squeezed out of the kernel view
                pl.BlockSpec((None, tm1, tk1), lambda b, i, j, k: (b, i, k)),
                pl.BlockSpec((tk1, tn1), lambda b, i, j, k: (k, j)),
            ],
            out_specs=pl.BlockSpec(
                (tm1, tn1), lambda b, i, j, k: (i, b * nf1 + j)),
            scratch_shapes=[pltpu.VMEM((tm1, tn1), jnp.float32)],
        ),
        compiler_params=pltpu.CompilerParams(
            dimension_semantics=("parallel", "parallel", "parallel",
                                 "arbitrary"),
            vmem_limit_bytes=vmem_limit,
        ),
        cost_estimate=cost1,
    )(x_p, w_p)

    # ---------------------------------------------- stage 2: adj @ support
    BF = B * F_out_pad
    tm2 = N_pad if N_pad <= _MAX_MN_TILE else _pick_tile(N_pad, _MAX_MN_TILE)
    tn2 = _pick_tile(BF, _MAX_MN_TILE)
    tk2 = N_pad if N_pad <= _FULL_K_MAX else _pick_tile(N_pad, _MAX_K_TILE)
    grid2 = (N_pad // tm2, BF // tn2, N_pad // tk2)

    adj_spec = pl.BlockSpec((tm2, tk2), lambda i, j, k: (i, k))
    s_spec = pl.BlockSpec((tk2, tn2), lambda i, j, k: (k, j))
    o_spec = pl.BlockSpec((tm2, tn2), lambda i, j, k: (i, j))
    scratch2 = [pltpu.VMEM((tm2, tn2), jnp.float32)]
    cparams2 = pltpu.CompilerParams(
        dimension_semantics=("parallel", "parallel", "arbitrary"),
        vmem_limit_bytes=vmem_limit,
    )
    cost2 = pl.CostEstimate(
        flops=2 * N_pad * N_pad * BF,
        transcendentals=0,
        bytes_accessed=(N_pad * N_pad * (BF // tn2) * cdt_size
                        + N_pad * BF * (N_pad // tm2) * cdt_size
                        + N_pad * BF * out_size),
    )
    out_shape2 = jax.ShapeDtypeStruct((N_pad, BF), out_dtype)

    if bias is not None:
        b_flat = bias.reshape(-1).astype(jnp.float32)       # (F_out,)
        if F_out_pad != F_out:
            b_flat = jnp.zeros((F_out_pad,), jnp.float32).at[:F_out].set(b_flat)
        b_fold = jnp.tile(b_flat, B).reshape(1, BF)          # batch-folded bias
        b_spec = pl.BlockSpec((1, tn2), lambda i, j, k: (0, j))
        out2 = pl.pallas_call(
            functools.partial(_mm_bias_kernel, k_axis=2),
            out_shape=out_shape2,
            grid_spec=pltpu.PrefetchScalarGridSpec(
                num_scalar_prefetch=0,
                grid=grid2,
                in_specs=[adj_spec, s_spec, b_spec],
                out_specs=o_spec,
                scratch_shapes=scratch2,
            ),
            compiler_params=cparams2,
            cost_estimate=cost2,
        )(adj_p, support, b_fold)
    else:
        out2 = pl.pallas_call(
            functools.partial(_mm_kernel, k_axis=2),
            out_shape=out_shape2,
            grid_spec=pltpu.PrefetchScalarGridSpec(
                num_scalar_prefetch=0,
                grid=grid2,
                in_specs=[adj_spec, s_spec],
                out_specs=o_spec,
                scratch_shapes=scratch2,
            ),
            compiler_params=cparams2,
            cost_estimate=cost2,
        )(adj_p, support)

    # Un-fold the batch from the column dimension and strip padding.
    out = out2.reshape(N_pad, B, F_out_pad).transpose(1, 0, 2)[:, :N, :F_out]
    if x_was_2d and bias is None:
        out = out[0]   # matches torch broadcasting: 2-D input, no bias -> 2-D
    return out


# ------------------------------------------------------------------ params

def init_params(key, in_features, out_features, bias=True, dtype=jnp.float32):
    # Matches reset_parameters(): uniform(-stdv, stdv), stdv = 1/sqrt(out_features)
    stdv = 1.0 / math.sqrt(out_features)
    kw, kb = jax.random.split(key)
    weight = jax.random.uniform(
        kw, (in_features, out_features), dtype=dtype, minval=-stdv, maxval=stdv)
    b = None
    if bias:
        b = jax.random.uniform(
            kb, (1, 1, out_features), dtype=dtype, minval=-stdv, maxval=stdv)
    return weight, b


# ------------------------------------------------------------------ demo

if __name__ == "__main__":
    key = jax.random.PRNGKey(0)
    k_x, k_adj, k_params, k_x2, k_adj2, k_params2 = jax.random.split(key, 6)

    # ---- small case (matches the module's typical tiny label graph) ----
    B, N, F_in, F_out = 2, 16, 32, 64

    x = jax.random.normal(k_x, (B, N, F_in), dtype=jnp.float32)
    a_raw = jax.random.uniform(k_adj, (N, N), dtype=jnp.float32)
    a_sym = (a_raw + a_raw.T) * 0.5 + jnp.eye(N, dtype=jnp.float32)
    adj = a_sym / jnp.sum(a_sym, axis=-1, keepdims=True)
    weight, bias = init_params(k_params, F_in, F_out, bias=True)

    support_ref = jnp.matmul(x, weight)
    out_ref_bias = jnp.matmul(adj, support_ref) + bias
    out_ref_nobias = jnp.matmul(adj, support_ref)

    # Exact f32 path, with and without bias (bias=False is the module default).
    out_f32 = jax.block_until_ready(
        graph_convolution(x, adj, weight, bias, compute_dtype=jnp.float32))
    assert out_f32.shape == (B, N, F_out)
    assert jnp.allclose(out_f32, out_ref_bias, atol=2e-5, rtol=2e-5)

    out_nb = jax.block_until_ready(
        graph_convolution(x, adj, weight, None, compute_dtype=jnp.float32))
    assert jnp.allclose(out_nb, out_ref_nobias, atol=2e-5, rtol=2e-5)

    # Default bf16 fast path (f32 accumulation inside).
    out_bf16 = jax.block_until_ready(graph_convolution(x, adj, weight, bias))
    assert out_bf16.shape == (B, N, F_out)
    assert jnp.allclose(out_bf16, out_ref_bias, atol=5e-2, rtol=5e-2)

    # ---- medium case exercising batch folding / unpadded K (F_in=300) ----
    B2, N2, F_in2, F_out2 = 3, 72, 300, 256
    x2 = jax.random.normal(k_x2, (B2, N2, F_in2), dtype=jnp.float32)
    a2 = jax.random.uniform(k_adj2, (N2, N2), dtype=jnp.float32)
    a2 = (a2 + a2.T) * 0.5 + jnp.eye(N2, dtype=jnp.float32)
    adj2 = a2 / jnp.sum(a2, axis=-1, keepdims=True)
    weight2, bias2 = init_params(k_params2, F_in2, F_out2, bias=True)

    ref2 = jnp.matmul(adj2, jnp.matmul(x2, weight2)) + bias2
    out2 = jax.block_until_ready(graph_convolution(x2, adj2, weight2, bias2))
    assert out2.shape == (B2, N2, F_out2)
    assert jnp.allclose(out2, ref2, atol=7e-2, rtol=7e-2)

    print("KERNEL_OK")
</pallas_src>

<mosaic_0001>
module attributes {stable_mosaic.version = 11 : i64} {
  func.func @_mm_bias_kernel(%arg0: i32, %arg1: i32, %arg2: i32, %arg3: memref<16x16xf32, #tpu.memory_space<vmem>>, %arg4: memref<16x256xf32, #tpu.memory_space<vmem>>, %arg5: memref<1x256xf32, #tpu.memory_space<vmem>>, %arg6: memref<16x256xf32, #tpu.memory_space<vmem>>, %arg7: memref<16x256xf32, #tpu.memory_space<vmem>>) attributes {dimension_semantics = [#tpu.dimension_semantics<parallel>, #tpu.dimension_semantics<parallel>, #tpu.dimension_semantics<arbitrary>], iteration_bounds = array<i64: 1, 1, 1>, scalar_prefetch = 0 : i64, scratch_operands = 1 : i64, tpu.core_type = #tpu.core_type<tc>, window_params = [{transform_indices = @transform_0, window_bounds = array<i64: 16, 16>}, {transform_indices = @transform_1, window_bounds = array<i64: 16, 256>}, {transform_indices = @transform_2, window_bounds = array<i64: 1, 256>}, {transform_indices = @transform_3, window_bounds = array<i64: 16, 256>}]} {
    %c0_i32 = arith.constant 0 : i32
    %0 = arith.cmpi eq, %arg2, %c0_i32 : i32
    %1 = arith.extui %0 : i1 to i32
    %c0_i32_0 = arith.constant 0 : i32
    %2 = arith.cmpi ne, %1, %c0_i32_0 : i32
    scf.if %2 {
      %cst_10 = arith.constant 0.000000e+00 : f32
      %12 = vector.broadcast %cst_10 : f32 to vector<16x256xf32>
      %c0_11 = arith.constant 0 : index
      %c0_12 = arith.constant 0 : index
      %13 = vector.load %arg7[%c0_11, %c0_12] : memref<16x256xf32, #tpu.memory_space<vmem>>, vector<16x256xf32>
      tpu.vector_store %arg7[%c0_11, %c0_12], %12 {strides = array<i32>} : memref<16x256xf32, #tpu.memory_space<vmem>>, vector<16x256xf32>,
    } else {
    }
    %c0 = arith.constant 0 : index
    %c0_1 = arith.constant 0 : index
    %3 = vector.load %arg7[%c0, %c0_1] : memref<16x256xf32, #tpu.memory_space<vmem>>, vector<16x256xf32>
    %c0_2 = arith.constant 0 : index
    %c0_3 = arith.constant 0 : index
    %4 = vector.load %arg3[%c0_2, %c0_3] : memref<16x16xf32, #tpu.memory_space<vmem>>, vector<16x16xf32>
    %c0_4 = arith.constant 0 : index
    %c0_5 = arith.constant 0 : index
    %5 = vector.load %arg4[%c0_4, %c0_5] : memref<16x256xf32, #tpu.memory_space<vmem>>, vector<16x256xf32>
    %cst = arith.constant dense<0.000000e+00> : vector<16x256xf32>
    %6 = tpu.matmul %4, %5, %cst {dimension_numbers = #tpu.dot_dimension_numbers<[1], [0], [0], [1], [0, 0, 1, 1], [], []>} : vector<16x16xf32>, vector<16x256xf32>, vector<16x256xf32> -> vector<16x256xf32>
    %7 = arith.addf %3, %6 : vector<16x256xf32>
    %c0_6 = arith.constant 0 : index
    %c0_7 = arith.constant 0 : index
    %8 = vector.load %arg7[%c0_6, %c0_7] : memref<16x256xf32, #tpu.memory_space<vmem>>, vector<16x256xf32>
    tpu.vector_store %arg7[%c0_6, %c0_7], %7 {strides = array<i32>} : memref<16x256xf32, #tpu.memory_space<vmem>>, vector<16x256xf32>,
    %c0_i32_8 = arith.constant 0 : i32
    %9 = arith.cmpi eq, %arg2, %c0_i32_8 : i32
    %10 = arith.extui %9 : i1 to i32
    %c0_i32_9 = arith.constant 0 : i32
    %11 = arith.cmpi ne, %10, %c0_i32_9 : i32
    scf.if %11 {
      %c0_10 = arith.constant 0 : index
      %c0_11 = arith.constant 0 : index
      %12 = vector.load %arg7[%c0_10, %c0_11] : memref<16x256xf32, #tpu.memory_space<vmem>>, vector<16x256xf32>
      %c0_12 = arith.constant 0 : index
      %c0_13 = arith.constant 0 : index
      %13 = vector.load %arg5[%c0_12, %c0_13] : memref<1x256xf32, #tpu.memory_space<vmem>>, vector<1x256xf32>
      %14 = vector.broadcast %13 : vector<1x256xf32> to vector<16x256xf32>
      %15 = arith.addf %12, %14 : vector<16x256xf32>
      %c0_14 = arith.constant 0 : index
      %c0_15 = arith.constant 0 : index
      %16 = vector.load %arg6[%c0_14, %c0_15] : memref<16x256xf32, #tpu.memory_space<vmem>>, vector<16x256xf32>
      tpu.vector_store %arg6[%c0_14, %c0_15], %15 {strides = array<i32>} : memref<16x256xf32, #tpu.memory_space<vmem>>, vector<16x256xf32>,
    } else {
    }
    return
  }
  func.func @transform_0(%arg0: i32, %arg1: i32, %arg2: i32) -> (i32, i32) {
    %c0_i32 = arith.constant 0 : i32
    return %arg0, %arg2 : i32, i32
  }
  func.func @transform_1(%arg0: i32, %arg1: i32, %arg2: i32) -> (i32, i32) {
    %c0_i32 = arith.constant 0 : i32
    return %arg2, %arg1 : i32, i32
  }
  func.func @transform_2(%arg0: i32, %arg1: i32, %arg2: i32) -> (i32, i32) {
    %c0_i32 = arith.constant 0 : i32
    %c0_i32_0 = arith.constant 0 : i32
    return %c0_i32, %arg1 : i32, i32
  }
  func.func @transform_3(%arg0: i32, %arg1: i32, %arg2: i32) -> (i32, i32) {
    %c0_i32 = arith.constant 0 : i32
    return %arg0, %arg1 : i32, i32
  }
}

module attributes {stable_mosaic.version = 11 : i64} {
  func.func @_mm_kernel(%arg0: i32, %arg1: i32, %arg2: i32, %arg3: i32, %arg4: memref<1x16x32xf32, #tpu.memory_space<vmem>>, %arg5: memref<32x128xf32, #tpu.memory_space<vmem>>, %arg6: memref<16x128xf32, #tpu.memory_space<vmem>>, %arg7: memref<16x128xf32, #tpu.memory_space<vmem>>) attributes {dimension_semantics = [#tpu.dimension_semantics<parallel>, #tpu.dimension_semantics<parallel>, #tpu.dimension_semantics<parallel>, #tpu.dimension_semantics<arbitrary>], iteration_bounds = array<i64: 2, 1, 1, 1>, scalar_prefetch = 0 : i64, scratch_operands = 1 : i64, tpu.core_type = #tpu.core_type<tc>, window_params = [{transform_indices = @transform_0, window_bounds = array<i64: 1, 16, 32>}, {transform_indices = @transform_1, window_bounds = array<i64: 32, 128>}, {transform_indices = @transform_2, window_bounds = array<i64: 16, 128>}]} {
    %c0_i32 = arith.constant 0 : i32
    %0 = arith.cmpi eq, %arg3, %c0_i32 : i32
    %1 = arith.extui %0 : i1 to i32
    %c0_i32_0 = arith.constant 0 : i32
    %2 = arith.cmpi ne, %1, %c0_i32_0 : i32
    scf.if %2 {
      %cst_11 = arith.constant 0.000000e+00 : f32
      %13 = vector.broadcast %cst_11 : f32 to vector<16x128xf32>
      %c0_12 = arith.constant 0 : index
      %c0_13 = arith.constant 0 : index
      %14 = vector.load %arg7[%c0_12, %c0_13] : memref<16x128xf32, #tpu.memory_space<vmem>>, vector<16x128xf32>
      tpu.vector_store %arg7[%c0_12, %c0_13], %13 {strides = array<i32>} : memref<16x128xf32, #tpu.memory_space<vmem>>, vector<16x128xf32>,
    } else {
    }
    %c0 = arith.constant 0 : index
    %c0_1 = arith.constant 0 : index
    %3 = vector.load %arg7[%c0, %c0_1] : memref<16x128xf32, #tpu.memory_space<vmem>>, vector<16x128xf32>
    %c0_2 = arith.constant 0 : index
    %c0_3 = arith.constant 0 : index
    %c0_4 = arith.constant 0 : index
    %4 = vector.load %arg4[%c0_2, %c0_3, %c0_4] : memref<1x16x32xf32, #tpu.memory_space<vmem>>, vector<1x16x32xf32>
    %5 = vector.shape_cast %4 : vector<1x16x32xf32> to vector<16x32xf32>
    %c0_5 = arith.constant 0 : index
    %c0_6 = arith.constant 0 : index
    %6 = vector.load %arg5[%c0_5, %c0_6] : memref<32x128xf32, #tpu.memory_space<vmem>>, vector<32x128xf32>
    %cst = arith.constant dense<0.000000e+00> : vector<16x128xf32>
    %7 = tpu.matmul %5, %6, %cst {dimension_numbers = #tpu.dot_dimension_numbers<[1], [0], [0], [1], [0, 0, 1, 1], [], []>} : vector<16x32xf32>, vector<32x128xf32>, vector<16x128xf32> -> vector<16x128xf32>
    %8 = arith.addf %3, %7 : vector<16x128xf32>
    %c0_7 = arith.constant 0 : index
    %c0_8 = arith.constant 0 : index
    %9 = vector.load %arg7[%c0_7, %c0_8] : memref<16x128xf32, #tpu.memory_space<vmem>>, vector<16x128xf32>
    tpu.vector_store %arg7[%c0_7, %c0_8], %8 {strides = array<i32>} : memref<16x128xf32, #tpu.memory_space<vmem>>, vector<16x128xf32>,
    %c0_i32_9 = arith.constant 0 : i32
    %10 = arith.cmpi eq, %arg3, %c0_i32_9 : i32
    %11 = arith.extui %10 : i1 to i32
    %c0_i32_10 = arith.constant 0 : i32
    %12 = arith.cmpi ne, %11, %c0_i32_10 : i32
    scf.if %12 {
      %c0_11 = arith.constant 0 : index
      %c0_12 = arith.constant 0 : index
      %13 = vector.load %arg7[%c0_11, %c0_12] : memref<16x128xf32, #tpu.memory_space<vmem>>, vector<16x128xf32>
      %c0_13 = arith.constant 0 : index
      %c0_14 = arith.constant 0 : index
      %14 = vector.load %arg6[%c0_13, %c0_14] : memref<16x128xf32, #tpu.memory_space<vmem>>, vector<16x128xf32>
      tpu.vector_store %arg6[%c0_13, %c0_14], %13 {strides = array<i32>} : memref<16x128xf32, #tpu.memory_space<vmem>>, vector<16x128xf32>,
    } else {
    }
    return
  }
  func.func @transform_0(%arg0: i32, %arg1: i32, %arg2: i32, %arg3: i32) -> (i32, i32, i32) {
    %c0_i32 = arith.constant 0 : i32
    return %arg0, %arg1, %arg3 : i32, i32, i32
  }
  func.func @transform_1(%arg0: i32, %arg1: i32, %arg2: i32, %arg3: i32) -> (i32, i32) {
    %c0_i32 = arith.constant 0 : i32
    return %arg3, %arg2 : i32, i32
  }
  func.func @transform_2(%arg0: i32, %arg1: i32, %arg2: i32, %arg3: i32) -> (i32, i32) {
    %c1_i32 = arith.constant 1 : i32
    %0 = arith.muli %arg0, %c1_i32 : i32
    %1 = arith.addi %0, %arg2 : i32
    %c0_i32 = arith.constant 0 : i32
    return %arg1, %1 : i32, i32
  }
}

</mosaic_0001>

<llo_original>
// kernel: tile.8
$region0: #{tile.8}
  #allocation0 [shape = 's32[1]{0}', space=sflag, size = 0x4, scoped, tag = 'scoped memory for tile.8']
  %s0 = inlined_call_operand.vmem [shape: f32[128], index: 0, kind: input, shape index: {}]
  %s1 = inlined_call_operand.vmem [shape: f32[2,128], index: 1, kind: output, shape index: {}]
  // Predicated region
  $region2: #{tile.8} parent=0 // pred_check
    _
  $region3: #{tile.8} parent=0 // pred_check_branch
    %3 = sbr.rel (0) target = $region5
  $region4: #{tile.8} parent=0 // pred_region
    _
  $region5: #{tile.8} parent=0 // pred_fallthru
    _
  %v4 = vld [vmem:[%s0] ss:$0 sm:$0xff]
  %5 = vst [vmem:[%s1] sm:$0x3] %v4

// kernel: graph_convolution.3
$region0: #{graph_convolution.3}
  #allocation0 [shape = 'u32[]', space=smem, size = 0x4, offset = 0x4, fixed_abs, tag = 'smem constant byte address 0x4 - core index']
  #allocation1 [shape = 'u32[144,128]{1,0:T(1,128)}', space=vmem, size = 0x12000, scoped, tag = 'internal scratch']
  #allocation2 [shape = 'f32[16,256]{1,0:T(8,128)}', space=vmem, size = 0x4000, scoped, tag = 'scratch operand']
  %s0 = inlined_call_operand.vmem [shape: f32[16,16], index: 0, kind: input, shape index: {}]
  %s1 = inlined_call_operand.vmem [shape: f32[16,256], index: 1, kind: input, shape index: {}]
  %s2 = inlined_call_operand.vmem [shape: f32[1,256], index: 2, kind: input, shape index: {}]
  %s3 = inlined_call_operand.vmem [shape: f32[16,256], index: 3, kind: output, shape index: {}]
  %s4 = sld [smem:[#allocation0]]
  $region30: #{graph_convolution.3} parent=0
    _
  %s6 = ssub.s32 1, %s4
  %s7 = scalar_select 0, %s6, %s4
  // Predicated region
  $region2: #{graph_convolution.3} parent=0 // pred_check
    _
  $region3: #{graph_convolution.3} parent=0 // pred_check_branch
    %9 = sbr.rel (0) target = $region5
  $region4: #{graph_convolution.3} parent=0 // pred_region
    _
  $region5: #{graph_convolution.3} parent=0 // pred_fallthru
    _
  // Predicated region
  $region6: #{graph_convolution.3} parent=0 // pred_check
    _
  $region7: #{graph_convolution.3} parent=0 // pred_check_branch
    %11 = sbr.rel (0) target = $region9
  $region8: #{graph_convolution.3} parent=0 // pred_region
    _
  $region9: #{graph_convolution.3} parent=0 // pred_fallthru
    _
  // Predicated region
  $region10: #{graph_convolution.3} parent=0 // pred_check
    _
  $region11: #{graph_convolution.3} parent=0 // pred_check_branch
    %13 = sbr.rel (0) target = $region13
  $region12: #{graph_convolution.3} parent=0 // pred_region
    _
  $region13: #{graph_convolution.3} parent=0 // pred_fallthru
    _
  %p14 = scmp.eq.s32.totalorder 0, 0
  // Predicated region
  $region14: #{graph_convolution.3} parent=0 // pred_check
    %p15 = pneg %p14
  $region15: #{graph_convolution.3} parent=0 // pred_check_branch
    %17 = sbr.rel (%p15) target = $region17
  $region16: #{graph_convolution.3} parent=0 // pred_region
    %18 = vst [vmem:[#allocation2] sm:$0xff] 0.0
    %19 = vst [vmem:[#allocation2 + $0x8] sm:$0xff] 0.0
    %20 = vst [vmem:[#allocation2 + $0x10] sm:$0xff] 0.0
    %21 = vst [vmem:[#allocation2 + $0x18] sm:$0xff] 0.0
  $region17: #{graph_convolution.3} parent=0 // pred_fallthru
    _
  %v22 = vld [vmem:[#allocation2] sm:$0xff]
  %v23 = vld [vmem:[#allocation2 + $0x8] sm:$0xff]
  %v24 = vld [vmem:[#allocation2 + $0x10] sm:$0xff]
  %v25 = vld [vmem:[#allocation2 + $0x18] sm:$0xff]
  %v26 = vld [vmem:[%s0] sm:$0xff]
  %v27 = vld [vmem:[%s0 + $0x8] sm:$0xff]
  %v28 = vld [vmem:[%s1] sm:$0xff]
  %v29 = vld [vmem:[%s1 + $0x8] sm:$0xff]
  %v30 = vld [vmem:[%s1 + $0x10] sm:$0xff]
  %v31 = vld [vmem:[%s1 + $0x18] sm:$0xff]
  %vm32 = vcmask 130048
  %v34 = vsel %vm32, %v26, 0
  %v37 = vsel %vm32, %v27, 0
  %39 = vmatprep.subr.mxu0 %v29
  %40 = vmatpush1.msra.mxu0 %v28
  %41 = vmatprep.subr.mxu0 %v31
  %42 = vmatpush1.msra.mxu0 %v30
  %43 = vmatprep.subr.mxu0 0.0
  %44 = vmatpush1.msra.mxu0 0.0
  %45 = vmatprep.subr.mxu0 0.0
  %46 = vmatpush1.msra.mxu0 0.0
  %47 = vmatprep.subr.mxu0 0.0
  %48 = vmatpush1.msra.mxu0 0.0
  %49 = vmatprep.subr.mxu0 0.0
  %50 = vmatpush1.msra.mxu0 0.0
  %51 = vmatprep.subr.mxu0 0.0
  %52 = vmatpush1.msra.mxu0 0.0
  %53 = vmatprep.subr.mxu0 0.0
  %54 = vmatpush1.msra.mxu0 0.0
  %55 = vmatprep.subr.mxu0 0.0
  %56 = vmatpush1.msra.mxu0 0.0
  %57 = vmatprep.subr.mxu0 0.0
  %58 = vmatpush1.msra.mxu0 0.0
  %59 = vmatprep.subr.mxu0 0.0
  %60 = vmatpush1.msra.mxu0 0.0
  %61 = vmatprep.subr.mxu0 0.0
  %62 = vmatpush1.msra.mxu0 0.0
  %63 = vmatprep.subr.mxu0 0.0
  %64 = vmatpush1.msra.mxu0 0.0
  %65 = vmatprep.subr.mxu0 0.0
  %66 = vmatpush1.msra.mxu0 0.0
  %67 = vmatprep.subr.mxu0 0.0
  %68 = vmatpush1.msra.mxu0 0.0
  %69 = vmatprep.subr.mxu0 0.0
  %70 = vmatpush1.msra.mxu0 0.0
  %71 = vmatprep.subr.mxu0 0.0
  %72 = vmatpush1.msra.mxu0 0.0
  %73 = vmatprep.subr.mxu0 0.0
  %74 = vmatpush1.msra.mxu0 0.0
  %75 = vmatprep.subr.mxu0 0.0
  %76 = vmatpush1.msra.mxu0 0.0
  %77 = vmatprep.subr.mxu0 0.0
  %78 = vmatpush1.msra.mxu0 0.0
  %79 = vmatprep.subr.mxu0 0.0
  %80 = vmatpush1.msra.mxu0 0.0
  %81 = vmatprep.subr.mxu0 0.0
  %82 = vmatpush1.msra.mxu0 0.0
  %83 = vmatprep.subr.mxu0 0.0
  %84 = vmatpush1.msra.mxu0 0.0
  %85 = vmatprep.subr.mxu0 0.0
  %86 = vmatpush1.msra.mxu0 0.0
  %87 = vmatprep.subr.mxu0 0.0
  %88 = vmatpush1.msra.mxu0 0.0
  %89 = vmatprep.subr.mxu0 0.0
  %90 = vmatpush1.msra.mxu0 0.0
  %91 = vmatprep.subr.mxu0 0.0
  %92 = vmatpush1.msra.mxu0 0.0
  %93 = vmatprep.subr.mxu0 0.0
  %94 = vmatpush1.msra.mxu0 0.0
  %95 = vmatprep.subr.mxu0 0.0
  %96 = vmatpush1.msra.mxu0 0.0
  %97 = vmatprep.subr.mxu0 0.0
  %98 = vmatpush1.msra.mxu0 0.0
  %99 = vmatprep.subr.mxu0 0.0
  %100 = vmatpush1.msra.mxu0 0.0
  %101 = vmatprep.subr.mxu0 0.0
  %102 = vmatpush1.msra.mxu0 0.0
  %103 = vmatprep.mubr.f32.mxu0 0.0
  %104 = vmatmul.mubr.f32.gmra.mrb[0].mxu0 %v34
  %v105 = vpop.f32.mrb[0].mxu0
  %v106 = vadd.f32 0.0, %v105
  %v107 = vpop.f32.mrb[0].mxu0
  %v108 = vadd.f32 0.0, %v107
  %109 = vmatprep.mubr.f32.mxu0 0.0
  %110 = vmatmul.mubr.f32.gmra.mrb[0].mxu0 %v37
  %v111 = vpop.f32.mrb[0].mxu0
  %v112 = vadd.f32 0.0, %v111
  %v113 = vpop.f32.mrb[0].mxu0
  %v114 = vadd.f32 0.0, %v113
  %115 = vdwg.mxu0
  %v116 = vadd.f32 %v22, %v106
  %v117 = vadd.f32 %v23, %v108
  %v118 = vadd.f32 %v24, %v112
  %v119 = vadd.f32 %v25, %v114
  %120 = vst [vmem:[#allocation2] sm:$0xff] %v116
  %121 = vst [vmem:[#allocation2 + $0x8] sm:$0xff] %v117
  %122 = vst [vmem:[#allocation2 + $0x10] sm:$0xff] %v118
  %123 = vst [vmem:[#allocation2 + $0x18] sm:$0xff] %v119
  // Predicated region
  $region18: #{graph_convolution.3} parent=0 // pred_check
    %p124 = pneg %p14
  $region19: #{graph_convolution.3} parent=0 // pred_check_branch
    %126 = sbr.rel (%p124) target = $region21
  $region20: #{graph_convolution.3} parent=0 // pred_region
    %v127 = vld [vmem:[#allocation2] sm:$0xff]
    %v128 = vld [vmem:[#allocation2 + $0x8] sm:$0xff]
    %v129 = vld [vmem:[#allocation2 + $0x10] sm:$0xff]
    %v130 = vld [vmem:[#allocation2 + $0x18] sm:$0xff]
    %v131 = vld [vmem:[%s2] sm:$0x3]
    %v133 = vlaneseq
    %v134 = vshrl.u32 %v133, 7
    %v135 = vsub.s32 0, %v134
    %v136 = vrot.slane %v131, %v135
    %v137 = vlaneseq
    %v138 = vshrl.u32 %v137, 7
    %v139 = vsub.s32 1, %v138
    %v140 = vrot.slane %v131, %v139
    %v143 = vadd.f32 %v127, %v136
    %v144 = vadd.f32 %v128, %v140
    %v145 = vadd.f32 %v129, %v136
    %v146 = vadd.f32 %v130, %v140
    %147 = vst [vmem:[%s3] sm:$0xff] %v143
    %148 = vst [vmem:[%s3 + $0x8] sm:$0xff] %v144
    %149 = vst [vmem:[%s3 + $0x10] sm:$0xff] %v145
    %150 = vst [vmem:[%s3 + $0x18] sm:$0xff] %v146
  $region21: #{graph_convolution.3} parent=0 // pred_fallthru
    _
  // Predicated region
  $region22: #{graph_convolution.3} parent=0 // pred_check
    _
  $region23: #{graph_convolution.3} parent=0 // pred_check_branch
    %152 = sbr.rel (0) target = $region25
  $region24: #{graph_convolution.3} parent=0 // pred_region
    _
  $region25: #{graph_convolution.3} parent=0 // pred_fallthru
    _
  // Predicated region
  $region26: #{graph_convolution.3} parent=0 // pred_check
    _
  $region27: #{graph_convolution.3} parent=0 // pred_check_branch
    %154 = sbr.rel (0) target = $region29
  $region28: #{graph_convolution.3} parent=0 // pred_region
    _
  $region29: #{graph_convolution.3} parent=0 // pred_fallthru
    _

// kernel: graph_convolution.2
$region0: #{graph_convolution.2}
  #allocation0 [shape = 'u32[]', space=smem, size = 0x4, offset = 0x4, fixed_abs, tag = 'smem constant byte address 0x4 - core index']
  #allocation1 [shape = 'u32[144,128]{1,0:T(1,128)}', space=vmem, size = 0x12000, scoped, tag = 'internal scratch']
  #allocation2 [shape = 'f32[16,128]{1,0:T(8,128)}', space=vmem, size = 0x2000, scoped, tag = 'scratch operand']
  %s0 = inlined_call_operand.vmem [shape: f32[2,16,32], index: 0, kind: input, shape index: {}]
  %s1 = inlined_call_operand.vmem [shape: f32[32,128], index: 1, kind: input, shape index: {}]
  %s2 = inlined_call_operand.vmem [shape: f32[16,256], index: 2, kind: output, shape index: {}]
  %s3 = sld [smem:[#allocation0]]
  $region83: #{graph_convolution.2} parent=0
    _
  %s5 = ssub.s32 1, %s3
  %s6 = scalar_select 0, %s5, %s3
  $region1: #{graph_convolution.2} parent=0
    #allocation3 [shape = 'u8[16384]{0}', space=vmem, size = 0x4000, scoped, tag = 'output window, operand 0']
    loop: start=0, step=1, limit=4
    $region2: #{graph_convolution.2} parent=1 // loop_pre_header
      _
    $region3: #{graph_convolution.2} parent=1 // loop_header
      %s8 = sphi 0, %s12
      %p9 = scmp.ge.s32.totalorder %s8, 4
      %s15 = sphi 0, %s41
      %s16 = sphi 0, %s37
      %s17 = sphi 0, %s33
      %s18 = sphi 0, %s29
      %s19 = sphi 0, %s15
      %s20 = sphi 0, %s16
      %s21 = sphi 0, %s17
      %s22 = sphi 0, %s18
      %s23 = sphi 0, %s19
      %s24 = sphi 0, %s20
      %s25 = sphi 0, %s21
      %s26 = sphi 0, %s22
      %s48 = sphi 0, %s50
      %s51 = sphi 0, %s48
      %s52 = sphi 0, %s51
      %s68 = sphi 0, %s52
      %s76 = sphi 0, %s78
      %s79 = sphi 0, %s76
      %s80 = sphi 0, %s79
      %s96 = sphi 0, %s80
      %s106 = sphi 0, %s108
      %s109 = sphi 0, %s106
      %s110 = sphi 0, %s109
      %s126 = sphi 0, %s110
    $region4: #{graph_convolution.2} parent=1 // loop_header_branch
      %11 = sbr.rel (%p9) target = $region8
    $region5: #{graph_convolution.2} parent=1 // loop_body
      %s13 = ssub.s32 %s8, 1
      %s14 = ssub.s32 %s8, 2
      %s27 = sadd.s32 1, %s18
      %p28 = scmp.ge.s32.totalorder %s27, 1
      %s29 = scalar_select %p28, 0, %s27
      %s30 = sadd.s32 1, %s17
      %s31 = scalar_select %p28, %s30, %s17
      %p32 = scmp.ge.s32.totalorder %s31, 1
      %s33 = scalar_select %p32, 0, %s31
      %s34 = sadd.s32 1, %s16
      %s35 = scalar_select %p32, %s34, %s16
      %p36 = scmp.ge.s32.totalorder %s35, 1
      %s37 = scalar_select %p36, 0, %s35
      %s38 = sadd.s32 1, %s15
      %s39 = scalar_select %p36, %s38, %s15
      %p40 = scmp.ge.s32.totalorder %s39, 2
      %s41 = scalar_select %p40, 0, %s39
      %s42 = ssub.s32 %s15, %s41
      %s43 = ssub.s32 %s16, %s37
      %s44 = sor.u32 %s42, %s43
      %s45 = ssub.s32 %s18, %s29
      %s46 = sor.u32 %s44, %s45
      %p47 = scmp.eq.s32.totalorder %s46, 0
      %s49 = sadd.s32 %s48, 1
      %s50 = scalar_select %p47, %s48, %s49
      %p53 = pneg %p47
      %p54 = scmp.eq.s32.totalorder %s8, 1
      %p55 = por %p53, %p54
      %p56 = scmp.ne.s32.totalorder %s48, %s51
      %p57 = scmp.eq.s32.totalorder %s8, 0
      %p58 = por %p56, %p57
      %p59 = scmp.ne.s32.totalorder %s48, %s51
      %p60 = scmp.eq.s32.totalorder %s13, 1
      %p61 = por %p59, %p60
      %p62 = scmp.ne.s32.totalorder %s51, %s52
      %p63 = scmp.eq.s32.totalorder %s13, 0
      %p64 = por %p62, %p63
      %p65 = scmp.ne.s32.totalorder %s51, %s52
      %p66 = scmp.eq.s32.totalorder %s14, 1
      %p67 = por %p65, %p66
      %p69 = scmp.ne.s32.totalorder %s52, %s68
      %p70 = scmp.eq.s32.totalorder %s14, 0
      %p71 = por %p69, %p70
      %s72 = ssub.s32 %s18, %s29
      %s73 = ssub.s32 %s17, %s33
      %s74 = sor.u32 %s72, %s73
      %p75 = scmp.eq.s32.totalorder %s74, 0
      %s77 = sadd.s32 %s76, 1
      %s78 = scalar_select %p75, %s76, %s77
      %p81 = pneg %p75
      %p82 = scmp.eq.s32.totalorder %s8, 1
      %p83 = por %p81, %p82
      %p84 = scmp.ne.s32.totalorder %s76, %s79
      %p85 = scmp.eq.s32.totalorder %s8, 0
      %p86 = por %p84, %p85
      %p87 = scmp.ne.s32.totalorder %s76, %s79
      %p88 = scmp.eq.s32.totalorder %s13, 1
      %p89 = por %p87, %p88
      %p90 = scmp.ne.s32.totalorder %s79, %s80
      %p91 = scmp.eq.s32.totalorder %s13, 0
      %p92 = por %p90, %p91
      %p93 = scmp.ne.s32.totalorder %s79, %s80
      %p94 = scmp.eq.s32.totalorder %s14, 1
      %p95 = por %p93, %p94
      %p97 = scmp.ne.s32.totalorder %s80, %s96
      %p98 = scmp.eq.s32.totalorder %s14, 0
      %p99 = por %p97, %p98
      %s100 = sadd.s32 %s15, %s17
      %s101 = sadd.s32 %s41, %s33
      %s102 = ssub.s32 %s16, %s37
      %s103 = ssub.s32 %s100, %s101
      %s104 = sor.u32 %s102, %s103
      %p105 = scmp.eq.s32.totalorder %s104, 0
      %s107 = sadd.s32 %s106, 1
      %s108 = scalar_select %p105, %s106, %s107
      %p111 = pneg %p105
      %p112 = scmp.eq.s32.totalorder %s8, 1
      %p113 = por %p111, %p112
      %p114 = scmp.ne.s32.totalorder %s106, %s109
      %p115 = scmp.eq.s32.totalorder %s8, 0
      %p116 = por %p114, %p115
      %p117 = scmp.ne.s32.totalorder %s106, %s109
      %p118 = scmp.eq.s32.totalorder %s13, 1
      %p119 = por %p117, %p118
      %p120 = scmp.ne.s32.totalorder %s109, %s110
      %p121 = scmp.eq.s32.totalorder %s13, 0
      %p122 = por %p120, %p121
      %p123 = scmp.ne.s32.totalorder %s109, %s110
      %p124 = scmp.eq.s32.totalorder %s14, 1
      %p125 = por %p123, %p124
      %p127 = scmp.ne.s32.totalorder %s110, %s126
      %p128 = scmp.eq.s32.totalorder %s14, 0
      %p129 = por %p127, %p128
      %p130 = scmp.le.s32.totalorder 1, %s8
      %p131 = scmp.lt.s32.totalorder %s8, 3
      %p132 = pnand %p130, %p131
      %p133 = pneg %p132
      // Predicated region
      $region9: #{graph_convolution.2} parent=5 // pred_check
        _
      $region10: #{graph_convolution.2} parent=5 // pred_check_branch
        %135 = sbr.rel (%p132) target = $region12
      $region11: #{graph_convolution.2} parent=5 // pred_region
        %s136 = ssub.s32 %s8, 1
        // Predicated region
        $region13: #{graph_convolution.2} parent=11 // pred_check
          %p137 = pneg %p92
        $region14: #{graph_convolution.2} parent=11 // pred_check_branch
          %139 = sbr.rel (%p137) target = $region16
        $region15: #{graph_convolution.2} parent=11 // pred_region
          %s140 = smul.u32 4, %s22
          %p141 = scmp.lt.s32.totalorder %s140, 3
          %s142 = scalar_select %p141, %s140, 3
          %p143 = scmp.lt.s32.totalorder %s21, 0
          %s144 = scalar_select %p143, %s21, 0
          %s145 = sadd.s32 %s144, %s142
          %s146 = smul.addr %s145, 8
          %s147 = scalar_lea.vmem %s1, %s146
          %s148 = smul.u32 4, %s22
        $region16: #{graph_convolution.2} parent=11 // pred_fallthru
          _
      $region12: #{graph_convolution.2} parent=5 // pred_fallthru
        _
      %p149 = scmp.lt.s32.totalorder %s8, 2
      // Predicated region
      $region17: #{graph_convolution.2} parent=5 // pred_check
        %p150 = pneg %p149
      $region18: #{graph_convolution.2} parent=5 // pred_check_branch
        %152 = sbr.rel (%p150) target = $region20
      $region19: #{graph_convolution.2} parent=5 // pred_region
        // Predicated region
        $region21: #{graph_convolution.2} parent=19 // pred_check
          %p153 = pneg %p58
        $region22: #{graph_convolution.2} parent=19 // pred_check_branch
          %155 = sbr.rel (%p153) target = $region24
        $region23: #{graph_convolution.2} parent=19 // pred_region
          %s156 = smul.u32 2, %s16
          %p157 = scmp.lt.s32.totalorder %s15, 1
          %s158 = scalar_select %p157, %s15, 1
          %p159 = scmp.lt.s32.totalorder %s156, 1
          %s160 = scalar_select %p159, %s156, 1
          %p161 = scmp.lt.s32.totalorder %s18, 0
          %s162 = scalar_select %p161, %s18, 0
          %s163 = sadd.s32 %s162, %s160
          %s164 = smul.addr %s158, 2
          %s165 = sadd.s32 %s163, %s164
          %s166 = smul.addr %s165, 8
          %s167 = scalar_lea.vmem %s0, %s166
          %s168 = smul.u32 2, %s16
        $region24: #{graph_convolution.2} parent=19 // pred_fallthru
          _
      $region20: #{graph_convolution.2} parent=5 // pred_fallthru
        _
      %p169 = scmp.le.s32.totalorder 1, %s8
      %p170 = scmp.lt.s32.totalorder %s8, 3
      %p171 = pnand %p169, %p170
      %p172 = pneg %p171
      // Predicated region
      $region25: #{graph_convolution.2} parent=5 // pred_check
        _
      $region26: #{graph_convolution.2} parent=5 // pred_check_branch
        %174 = sbr.rel (%p171) target = $region28
      $region27: #{graph_convolution.2} parent=5 // pred_region
        %s175 = ssub.s32 %s8, 1
        %s176 = smul.u32 2, %s20
        %p177 = scmp.lt.s32.totalorder %s19, 1
        %s178 = scalar_select %p177, %s19, 1
        %p179 = scmp.lt.s32.totalorder %s176, 1
        %s180 = scalar_select %p179, %s176, 1
        %p181 = scmp.lt.s32.totalorder %s22, 0
        %s182 = scalar_select %p181, %s22, 0
        %s183 = sadd.s32 %s182, %s180
        %s184 = smul.addr %s178, 2
        %s185 = sadd.s32 %s183, %s184
        %s186 = smul.addr %s185, 8
        %s187 = scalar_lea.vmem %s0, %s186
        %p188 = pneg %p64
        %p189 = pneg %p61
        %s190 = smul.u32 4, %s22
        %p191 = scmp.lt.s32.totalorder %s190, 3
        %s192 = scalar_select %p191, %s190, 3
        %p193 = scmp.lt.s32.totalorder %s21, 0
        %s194 = scalar_select %p193, %s21, 0
        %s195 = sadd.s32 %s194, %s192
        %s196 = smul.addr %s195, 8
        %s197 = scalar_lea.vmem %s1, %s196
        %p198 = pneg %p92
        %p199 = pneg %p89
        %p200 = pneg %p122
        %p201 = pneg %p119
        %s202 = sand.u32 %s109, 1
        %s203 = sand.u32 %s109, 1
        %s204 = smul.addr %s203, 16
        %s205 = scalar_lea.vmem [#allocation3], %s204
        %s206 = smul.u32 2, %s20
        %p207 = scmp.lt.s32.totalorder %s19, 1
        %s208 = scalar_select %p207, %s19, 1
        %p209 = scmp.lt.s32.totalorder %s206, 1
        %s210 = scalar_select %p209, %s206, 1
        %p211 = scmp.lt.s32.totalorder %s22, 0
        %s212 = scalar_select %p211, %s22, 0
        %s213 = sadd.s32 %s212, %s210
        %s214 = smul.addr %s208, 2
        %s215 = sadd.s32 %s213, %s214
        %s216 = smul.addr %s215, 8
        %s217 = scalar_lea.vmem %s0, %s216
        %s218 = smul.u32 2, %s20
        %s219 = smul.u32 4, %s22
        %p220 = scmp.lt.s32.totalorder %s219, 3
        %s221 = scalar_select %p220, %s219, 3
        %p222 = scmp.lt.s32.totalorder %s21, 0
        %s223 = scalar_select %p222, %s21, 0
        %s224 = sadd.s32 %s223, %s221
        %s225 = smul.addr %s224, 8
        %s226 = scalar_lea.vmem %s1, %s225
        %s227 = smul.u32 4, %s22
        %s228 = sadd.s32 %s19, %s21
        %s229 = smul.u32 2, %s20
        %p230 = scmp.eq.s32.totalorder %s22, 0
        // Predicated region
        $region29: #{graph_convolution.2} parent=27 // pred_check
          %p231 = pneg %p230
        $region30: #{graph_convolution.2} parent=27 // pred_check_branch
          %233 = sbr.rel (%p231) target = $region32
        $region31: #{graph_convolution.2} parent=27 // pred_region
          %234 = vst [vmem:[#allocation2] sm:$0xff] 0.0
          %235 = vst [vmem:[#allocation2 + $0x8] sm:$0xff] 0.0
        $region32: #{graph_convolution.2} parent=27 // pred_fallthru
          _
        %v236 = vld [vmem:[#allocation2] sm:$0xff]
        %v237 = vld [vmem:[#allocation2 + $0x8] sm:$0xff]
        %v238 = vld [vmem:[%s217] sm:$0xff]
        %v239 = vld [vmem:[%s217 + $0x8] sm:$0xff]
        %v240 = vld [vmem:[%s226] sm:$0xff]
        %v241 = vld [vmem:[%s226 + $0x8] sm:$0xff]
        %v242 = vld [vmem:[%s226 + $0x10] sm:$0xff]
        %v243 = vld [vmem:[%s226 + $0x18] sm:$0xff]
        %vm244 = vcmask 261120
        %v246 = vsel %vm244, %v238, 0
        %v249 = vsel %vm244, %v239, 0
        %251 = vmatprep.subr.mxu0 0.0
        %252 = vmatpush1.msra.mxu0 %v240
        %253 = vmatprep.subr.mxu0 0.0
        %254 = vmatpush1.msra.mxu0 %v241
        %255 = vmatprep.subr.mxu0 0.0
        %256 = vmatpush1.msra.mxu0 %v242
        %257 = vmatprep.subr.mxu0 0.0
        %258 = vmatpush1.msra.mxu0 %v243
        %259 = vmatprep.subr.mxu0 0.0
        %260 = vmatpush1.msra.mxu0 0.0
        %261 = vmatprep.subr.mxu0 0.0
        %262 = vmatpush1.msra.mxu0 0.0
        %263 = vmatprep.subr.mxu0 0.0
        %264 = vmatpush1.msra.mxu0 0.0
        %265 = vmatprep.subr.mxu0 0.0
        %266 = vmatpush1.msra.mxu0 0.0
        %267 = vmatprep.subr.mxu0 0.0
        %268 = vmatpush1.msra.mxu0 0.0
        %269 = vmatprep.subr.mxu0 0.0
        %270 = vmatpush1.msra.mxu0 0.0
        %271 = vmatprep.subr.mxu0 0.0
        %272 = vmatpush1.msra.mxu0 0.0
        %273 = vmatprep.subr.mxu0 0.0
        %274 = vmatpush1.msra.mxu0 0.0
        %275 = vmatprep.subr.mxu0 0.0
        %276 = vmatpush1.msra.mxu0 0.0
        %277 = vmatprep.subr.mxu0 0.0
        %278 = vmatpush1.msra.mxu0 0.0
        %279 = vmatprep.subr.mxu0 0.0
        %280 = vmatpush1.msra.mxu0 0.0
        %281 = vmatprep.subr.mxu0 0.0
        %282 = vmatpush1.msra.mxu0 0.0
        %283 = vmatprep.subr.mxu0 0.0
        %284 = vmatpush1.msra.mxu0 0.0
        %285 = vmatprep.subr.mxu0 0.0
        %286 = vmatpush1.msra.mxu0 0.0
        %287 = vmatprep.subr.mxu0 0.0
        %288 = vmatpush1.msra.mxu0 0.0
        %289 = vmatprep.subr.mxu0 0.0
        %290 = vmatpush1.msra.mxu0 0.0
        %291 = vmatprep.subr.mxu0 0.0
        %292 = vmatpush1.msra.mxu0 0.0
        %293 = vmatprep.subr.mxu0 0.0
        %294 = vmatpush1.msra.mxu0 0.0
        %295 = vmatprep.subr.mxu0 0.0
        %296 = vmatpush1.msra.mxu0 0.0
        %297 = vmatprep.subr.mxu0 0.0
        %298 = vmatpush1.msra.mxu0 0.0
        %299 = vmatprep.subr.mxu0 0.0
        %300 = vmatpush1.msra.mxu0 0.0
        %301 = vmatprep.subr.mxu0 0.0
        %302 = vmatpush1.msra.mxu0 0.0
        %303 = vmatprep.subr.mxu0 0.0
        %304 = vmatpush1.msra.mxu0 0.0
        %305 = vmatprep.subr.mxu0 0.0
        %306 = vmatpush1.msra.mxu0 0.0
        %307 = vmatprep.subr.mxu0 0.0
        %308 = vmatpush1.msra.mxu0 0.0
        %309 = vmatprep.subr.mxu0 0.0
        %310 = vmatpush1.msra.mxu0 0.0
        %311 = vmatprep.subr.mxu0 0.0
        %312 = vmatpush1.msra.mxu0 0.0
        %313 = vmatprep.subr.mxu0 0.0
        %314 = vmatpush1.msra.mxu0 0.0
        %315 = vmatprep.mubr.f32.mxu0 0.0
        %316 = vmatmul.mubr.f32.gmra.mrb[0].mxu0 %v246
        %v317 = vpop.f32.mrb[0].mxu0
        %v318 = vadd.f32 0.0, %v317
        %v319 = vpop.f32.mrb[0].mxu0
        %320 = vmatprep.mubr.f32.mxu0 0.0
        %321 = vmatmul.mubr.f32.gmra.mrb[0].mxu0 %v249
        %v322 = vpop.f32.mrb[0].mxu0
        %v323 = vadd.f32 0.0, %v322
        %v324 = vpop.f32.mrb[0].mxu0
        %325 = vdwg.mxu0
        %v326 = vadd.f32 %v236, %v318
        %v327 = vadd.f32 %v237, %v323
        %328 = vst [vmem:[#allocation2] sm:$0xff] %v326
        %329 = vst [vmem:[#allocation2 + $0x8] sm:$0xff] %v327
        // Predicated region
        $region33: #{graph_convolution.2} parent=27 // pred_check
          %p330 = pneg %p230
        $region34: #{graph_convolution.2} parent=27 // pred_check_branch
          %332 = sbr.rel (%p330) target = $region36
        $region35: #{graph_convolution.2} parent=27 // pred_region
          %v333 = vld [vmem:[#allocation2] sm:$0xff]
          %v334 = vld [vmem:[#allocation2 + $0x8] sm:$0xff]
          %335 = vst [vmem:[%s205] sm:$0xff] %v333
          %336 = vst [vmem:[%s205 + $0x8] sm:$0xff] %v334
        $region36: #{graph_convolution.2} parent=27 // pred_fallthru
          _
        %s337 = sand.u32 %s109, 1
        %s338 = sand.u32 %s109, 1
        %s339 = smul.addr %s338, 16
        %s340 = scalar_lea.vmem [#allocation3], %s339
        // Predicated region
        $region37: #{graph_convolution.2} parent=27 // pred_check
          %p341 = pneg %p119
        $region38: #{graph_convolution.2} parent=27 // pred_check_branch
          %343 = sbr.rel (%p341) target = $region40
        $region39: #{graph_convolution.2} parent=27 // pred_region
          %s344 = sadd.s32 %s19, %s21
          %s345 = smul.u32 2, %s20
          %s346 = smul.addr %s345, 2
          %s347 = sadd.s32 %s344, %s346
          %s348 = smul.addr %s347, 8
          %s349 = scalar_lea.vmem %s2, %s348
          // Predicated region
          $region41: #{graph_convolution.2} parent=39 // pred_check
            _
          $region42: #{graph_convolution.2} parent=39 // pred_check_branch
            %351 = sbr.rel (0) target = $region44
          $region43: #{graph_convolution.2} parent=39 // pred_region
            // Predicated region
            $region45: #{graph_convolution.2} parent=43 // pred_check
              _
            $region46: #{graph_convolution.2} parent=43 // pred_check_branch
              %353 = sbr.rel (0) target = $region48
            $region47: #{graph_convolution.2} parent=43 // pred_region
              // Predicated region
              $region60: #{graph_convolution.2} parent=47 // pred_check
                _
              $region61: #{graph_convolution.2} parent=47 // pred_check_branch
                %370 = sbr.rel (0) target = $region63
              $region62: #{graph_convolution.2} parent=47 // pred_region
                loop: start=0, step=1, limit=1
                $region64: #{graph_convolution.2} parent=62 // loop_pre_header
                  _
                $region65: #{graph_convolution.2} parent=62 // loop_header
                  %s372 = sphi 0, %s376
                  %p373 = scmp.ge.s32.totalorder %s372, 1
                  %s377 = sphi %s340, %s340
                  %s378 = sphi %s349, %s349
                $region66: #{graph_convolution.2} parent=62 // loop_header_branch
                  %375 = sbr.rel (%p373) target = $region70
                $region67: #{graph_convolution.2} parent=62 // loop_body
                  %v379 = vld [vmem:[%s377] sm:$0xff]
                  %380 = vst [vmem:[%s378] sm:$0xff] %v379
                  %v381 = vld [vmem:[%s377 + $0x8] sm:$0xff]
                  %382 = vst [vmem:[%s378 + $0x10] sm:$0xff] %v381
                $region68: #{graph_convolution.2} parent=62 // loop_footer
                  %s376 = sadd.s32 1, %s372
                $region69: #{graph_convolution.2} parent=62 // loop_footer_branch
                  %371 = sbr.rel target = $region65
                $region70: #{graph_convolution.2} parent=62 // loop_exit
                  _
              $region63: #{graph_convolution.2} parent=47 // pred_fallthru
                _
              // Predicated region
              $region71: #{graph_convolution.2} parent=47 // pred_check
                _
              $region72: #{graph_convolution.2} parent=47 // pred_check_branch
                %384 = sbr.rel target = $region74
              $region73: #{graph_convolution.2} parent=47 // pred_region
                _
              $region74: #{graph_convolution.2} parent=47 // pred_fallthru
                _
            $region48: #{graph_convolution.2} parent=43 // pred_fallthru
              _
            // Predicated region
            $region49: #{graph_convolution.2} parent=43 // pred_check
              _
            $region50: #{graph_convolution.2} parent=43 // pred_check_branch
              %355 = sbr.rel target = $region52
            $region51: #{graph_convolution.2} parent=43 // pred_region
              loop: start=0, step=1, limit=1
              $region53: #{graph_convolution.2} parent=51 // loop_pre_header
                _
              $region54: #{graph_convolution.2} parent=51 // loop_header
                %s358 = sphi 0, %s362
                %p359 = scmp.ge.s32.totalorder %s358, 1
                %s363 = sphi %s340, %s340
                %s364 = sphi %s349, %s349
              $region55: #{graph_convolution.2} parent=51 // loop_header_branch
                %361 = sbr.rel (%p359) target = $region59
              $region56: #{graph_convolution.2} parent=51 // loop_body
                %v365 = vld [vmem:[%s363] sm:$0xff]
                %366 = vst [vmem:[%s364] sm:$0xff] %v365
                %v367 = vld [vmem:[%s363 + $0x8] sm:$0xff]
                %368 = vst [vmem:[%s364 + $0x10] sm:$0xff] %v367
              $region57: #{graph_convolution.2} parent=51 // loop_footer
                %s362 = sadd.s32 1, %s358
              $region58: #{graph_convolution.2} parent=51 // loop_footer_branch
                %357 = sbr.rel target = $region54
              $region59: #{graph_convolution.2} parent=51 // loop_exit
                _
            $region52: #{graph_convolution.2} parent=43 // pred_fallthru
              _
          $region44: #{graph_convolution.2} parent=39 // pred_fallthru
            _
          %385 = vnop
        $region40: #{graph_convolution.2} parent=27 // pred_fallthru
          _
      $region28: #{graph_convolution.2} parent=5 // pred_fallthru
        _
      %p386 = scmp.le.s32.totalorder 2, %s8
      // Predicated region
      $region75: #{graph_convolution.2} parent=5 // pred_check
        %p387 = pneg %p386
      $region76: #{graph_convolution.2} parent=5 // pred_check_branch
        %389 = sbr.rel (%p387) target = $region78
      $region77: #{graph_convolution.2} parent=5 // pred_region
        %s390 = ssub.s32 %s8, 2
        // Predicated region
        $region79: #{graph_convolution.2} parent=77 // pred_check
          %p391 = pneg %p125
        $region80: #{graph_convolution.2} parent=77 // pred_check_branch
          %393 = sbr.rel (%p391) target = $region82
        $region81: #{graph_convolution.2} parent=77 // pred_region
          %s394 = sand.u32 %s110, 1
          %s395 = sand.u32 %s110, 1
          %s396 = smul.addr %s395, 16
          %s397 = scalar_lea.vmem [#allocation3], %s396
        $region82: #{graph_convolution.2} parent=77 // pred_fallthru
          _
      $region78: #{graph_convolution.2} parent=5 // pred_fallthru
        _
    $region6: #{graph_convolution.2} parent=1 // loop_footer
      %s12 = sadd.s32 1, %s8
    $region7: #{graph_convolution.2} parent=1 // loop_footer_branch
      %7 = sbr.rel target = $region3
    $region8: #{graph_convolution.2} parent=1 // loop_exit
      _

</llo_original>
